<compile_context>
chip_gen: v5e
topology: v5e:2x2
jax: 0.10.0
libtpu: 0.0.40
codegen_flags: <defaults>
</compile_context>

<pallas_src>
import jax
import jax.numpy as jnp
from jax import lax
from jax.experimental import pallas as pl
from jax.experimental.pallas import tpu as pltpu

NUM_MODULES = 8
BLOCKS_PER_MODULE = 3            # each XceptionMiddleModule has 3 (ReLU, SepConv, BN) blocks
NUM_BLOCKS = NUM_MODULES * BLOCKS_PER_MODULE
BN_EPS = 1e-5


def _make_kernel(N, H, W, C):
    NH = N * H
    L = W * C

    def kernel(x_ref, dwt_ref, pwbd_ref, shift_ref, o_ref, carry_ref):
        # x_ref:     (NH, L)       input activations, sublane = n*H + h, lane = w*C + c
        # dwt_ref:   (1, 9, 1, L)  depthwise taps for this block, tiled over W
        # pwbd_ref:  (1, L, L)     block-diagonal 1x1 weights (BN scale folded in)
        # shift_ref: (1, 1, L)     BN shift tiled over W
        # o_ref:     (NH, L)       output (resident across the blk axis)
        # carry_ref: (NH, L) f32   activation carried block -> block
        blk = pl.program_id(0)

        @pl.when(blk == 0)
        def _():
            carry_ref[...] = x_ref[...].astype(jnp.float32)

        # ReLU
        h = jnp.maximum(carry_ref[...], 0.0)

        row = lax.broadcasted_iota(jnp.int32, (NH, L), 0)    # global row = n*H + h
        lane = lax.broadcasted_iota(jnp.int32, (NH, L), 1)   # lane = w*C + c
        imrow = row % H
        top = imrow == 0          # no valid row above   (dh = -1 source invalid)
        bot = imrow == H - 1      # no valid row below   (dh = +1 source invalid)
        left = lane < C           # no valid column left (dw = -1 source invalid)
        right = lane >= L - C     # no valid column right(dw = +1 source invalid)

        # Depthwise 3x3, padding=1: 9 in-register shifted MACs.
        acc = jnp.zeros((NH, L), jnp.float32)
        for ki in range(3):
            dh = ki - 1
            if dh == 0:
                sh = h
            else:
                sh = pltpu.roll(h, shift=(-dh) % NH, axis=0)           # sublane roll
                sh = jnp.where(bot if dh == 1 else top, 0.0, sh)       # zero border (H)
            for kj in range(3):
                dwv = kj - 1
                if dwv == 0:
                    sw = sh
                else:
                    sw = pltpu.roll(sh, shift=(-dwv * C) % L, axis=1)  # lane roll by C
                    sw = jnp.where(right if dwv == 1 else left, 0.0, sw)
                tap = dwt_ref[0, ki * 3 + kj]                          # (1, L)
                acc = acc + sw * tap

        # 1x1 pointwise conv (+ folded BN scale) as one MXU matmul, then BN shift.
        y = jnp.dot(acc, pwbd_ref[0], preferred_element_type=jnp.float32)
        y = y + shift_ref[0]
        carry_ref[...] = y

        @pl.when(blk == pl.num_programs(0) - 1)
        def _():
            o_ref[...] = y.astype(o_ref.dtype)

    return kernel


def middle_flow_pallas(x_nchw, dw, pw, scale, shift):
    N, C, H, W = x_nchw.shape
    L = W * C
    NH = N * H

    # NCHW -> NHWC -> (N*H, W*C)  (lane-dense last dim, batch folded into sublanes)
    x = jnp.transpose(x_nchw, (0, 2, 3, 1)).reshape(NH, L)

    # Depthwise taps tiled over W: dwt[blk, ki*3+kj, 0, w*C+c] = dw[blk, ki, kj, c]
    dwt = jnp.tile(dw.reshape(NUM_BLOCKS, 9, 1, C), (1, 1, W, 1)).reshape(
        NUM_BLOCKS, 9, L)[:, :, None, :]

    # Fold BN scale into pointwise weights, expand to block-diagonal over W:
    # pwbd[blk, w*C+ci, v*C+co] = pw[blk, ci, co] * scale[blk, co] * (w == v)
    pw_folded = pw * scale[:, None, :]                                   # (blk, Cin, Cout)
    eye_w = jnp.eye(W, dtype=pw.dtype)
    pwbd = jnp.einsum('bio,wv->bwivo', pw_folded, eye_w).reshape(NUM_BLOCKS, L, L)

    # BN shift tiled over W: shift_t[blk, 0, w*C+c] = shift[blk, c]
    shift_t = jnp.tile(shift[:, None, :], (1, W, 1)).reshape(NUM_BLOCKS, 1, L)

    flops = NUM_BLOCKS * (2 * 9 * NH * L + 2 * NH * L * L)
    bytes_accessed = 4 * (2 * NH * L + NUM_BLOCKS * (9 * L + L * L + L))

    out = pl.pallas_call(
        _make_kernel(N, H, W, C),
        out_shape=jax.ShapeDtypeStruct((NH, L), x.dtype),
        grid=(NUM_BLOCKS,),
        in_specs=[
            pl.BlockSpec((NH, L), lambda b: (0, 0)),            # x: resident over blk
            pl.BlockSpec((1, 9, 1, L), lambda b: (b, 0, 0, 0)),  # per-block dw taps (streamed)
            pl.BlockSpec((1, L, L), lambda b: (b, 0, 0)),        # per-block pw (streamed)
            pl.BlockSpec((1, 1, L), lambda b: (b, 0, 0)),        # per-block BN shift (streamed)
        ],
        out_specs=pl.BlockSpec((NH, L), lambda b: (0, 0)),       # resident over blk
        scratch_shapes=[pltpu.VMEM((NH, L), jnp.float32)],
        compiler_params=pltpu.CompilerParams(
            dimension_semantics=("arbitrary",)),
        cost_estimate=pl.CostEstimate(
            flops=flops, transcendentals=0, bytes_accessed=bytes_accessed),
    )(x, dwt, pwbd, shift_t)

    return jnp.transpose(out.reshape(N, H, W, C), (0, 3, 1, 2))     # back to NCHW


def init_params(key, C):
    k0, k1, k2, k3, k4 = jax.random.split(key, 5)
    dw = jax.random.normal(k0, (NUM_BLOCKS, 3, 3, C), jnp.float32) / 3.0
    pw = jax.random.normal(k1, (NUM_BLOCKS, C, C), jnp.float32) / jnp.sqrt(C).astype(jnp.float32)
    gamma = 1.0 + 0.1 * jax.random.normal(k2, (NUM_BLOCKS, C), jnp.float32)
    beta = 0.05 * jax.random.normal(k3, (NUM_BLOCKS, C), jnp.float32)
    running_mean = 0.05 * jax.random.normal(k4, (NUM_BLOCKS, C), jnp.float32)
    running_var = jnp.ones((NUM_BLOCKS, C), jnp.float32)
    scale = gamma / jnp.sqrt(running_var + BN_EPS)
    shift = beta - running_mean * scale
    return dw, pw, scale, shift


def middle_flow_reference(x_nchw, dw, pw, scale, shift):
    """Pure-JAX (lax.conv) reference with PyTorch NCHW/OIHW semantics."""
    x = x_nchw
    C = x.shape[1]
    for blk in range(NUM_BLOCKS):
        x = jax.nn.relu(x)
        dw_oihw = jnp.transpose(dw[blk], (2, 0, 1))[:, None, :, :]        # (C,1,3,3)
        x = lax.conv_general_dilated(
            x, dw_oihw, (1, 1), ((1, 1), (1, 1)),
            feature_group_count=C,
            dimension_numbers=('NCHW', 'OIHW', 'NCHW'))
        pw_oihw = jnp.transpose(pw[blk], (1, 0))[:, :, None, None]        # (Cout,Cin,1,1)
        x = lax.conv_general_dilated(
            x, pw_oihw, (1, 1), 'VALID',
            dimension_numbers=('NCHW', 'OIHW', 'NCHW'))
        x = x * scale[blk][None, :, None, None] + shift[blk][None, :, None, None]
    return x


if __name__ == "__main__":
    key = jax.random.PRNGKey(0)
    kx, kp = jax.random.split(key)

    N, C, H, W = 2, 8, 16, 16          # W*C = 128 lanes, N*H = 32 sublanes
    x = jax.random.normal(kx, (N, C, H, W), jnp.float32)
    dw, pw, scale, shift = init_params(kp, C)

    mf = jax.jit(middle_flow_pallas)
    out = jax.block_until_ready(mf(x, dw, pw, scale, shift))

    ref = jax.jit(middle_flow_reference)(x, dw, pw, scale, shift)
    ref = jax.block_until_ready(ref)
    assert out.shape == ref.shape == (N, C, H, W)
    assert jnp.allclose(out, ref, rtol=1e-3, atol=1e-3), (
        f"max abs diff {jnp.max(jnp.abs(out - ref))}")

    print("KERNEL_OK")
</pallas_src>

<mosaic_0001>
module attributes {stable_mosaic.version = 11 : i64} {
  func.func @kernel(%arg0: i32, %arg1: memref<32x128xf32, #tpu.memory_space<vmem>>, %arg2: memref<1x9x1x128xf32, #tpu.memory_space<vmem>>, %arg3: memref<1x128x128xf32, #tpu.memory_space<vmem>>, %arg4: memref<1x1x128xf32, #tpu.memory_space<vmem>>, %arg5: memref<32x128xf32, #tpu.memory_space<vmem>>, %arg6: memref<32x128xf32, #tpu.memory_space<vmem>>) attributes {dimension_semantics = [#tpu.dimension_semantics<arbitrary>], iteration_bounds = array<i64: 24>, scalar_prefetch = 0 : i64, scratch_operands = 1 : i64, tpu.core_type = #tpu.core_type<tc>, window_params = [{pipeline_mode = #tpu.pipeline_mode<synchronous>, transform_indices = @transform_0, window_bounds = array<i64: 32, 128>}, {transform_indices = @transform_1, window_bounds = array<i64: 1, 9, 1, 128>}, {transform_indices = @transform_2, window_bounds = array<i64: 1, 128, 128>}, {transform_indices = @transform_3, window_bounds = array<i64: 1, 1, 128>}, {pipeline_mode = #tpu.pipeline_mode<synchronous>, transform_indices = @transform_4, window_bounds = array<i64: 32, 128>}]} {
    %c0_i32 = arith.constant 0 : i32
    %0 = arith.cmpi eq, %arg0, %c0_i32 : i32
    %1 = arith.extui %0 : i1 to i32
    %c0_i32_0 = arith.constant 0 : i32
    %2 = arith.cmpi ne, %1, %c0_i32_0 : i32
    scf.if %2 {
      %c0_61 = arith.constant 0 : index
      %c0_62 = arith.constant 0 : index
      %113 = vector.load %arg1[%c0_61, %c0_62] : memref<32x128xf32, #tpu.memory_space<vmem>>, vector<32x128xf32>
      %c0_63 = arith.constant 0 : index
      %c0_64 = arith.constant 0 : index
      %114 = vector.load %arg6[%c0_63, %c0_64] : memref<32x128xf32, #tpu.memory_space<vmem>>, vector<32x128xf32>
      tpu.vector_store %arg6[%c0_63, %c0_64], %113 {strides = array<i32>} : memref<32x128xf32, #tpu.memory_space<vmem>>, vector<32x128xf32>,
    } else {
    }
    %c0 = arith.constant 0 : index
    %c0_1 = arith.constant 0 : index
    %3 = vector.load %arg6[%c0, %c0_1] : memref<32x128xf32, #tpu.memory_space<vmem>>, vector<32x128xf32>
    %cst = arith.constant 0.000000e+00 : f32
    %4 = vector.broadcast %cst : f32 to vector<32x128xf32>
    %5 = arith.maximumf %3, %4 : vector<32x128xf32>
    %6 = tpu.iota {dimensions = array<i32: 0>} : vector<32x128xi32>
    %7 = tpu.iota {dimensions = array<i32: 1>} : vector<32x128xi32>
    %c16_i32 = arith.constant 16 : i32
    %c0_i32_2 = arith.constant 0 : i32
    %8 = arith.cmpi eq, %c16_i32, %c0_i32_2 : i32
    %c1_i32 = arith.constant 1 : i32
    %9 = arith.select %8, %c1_i32, %c16_i32 : i32
    %10 = vector.broadcast %9 : i32 to vector<32x128xi32>
    %11 = arith.remsi %6, %10 : vector<32x128xi32>
    %c0_i32_3 = arith.constant 0 : i32
    %12 = vector.broadcast %c0_i32_3 : i32 to vector<32x128xi32>
    %13 = arith.cmpi ne, %11, %12 : vector<32x128xi32>
    %c0_i32_4 = arith.constant 0 : i32
    %14 = vector.broadcast %c0_i32_4 : i32 to vector<32x128xi32>
    %15 = arith.cmpi slt, %11, %14 : vector<32x128xi32>
    %c0_i32_5 = arith.constant 0 : i32
    %16 = arith.cmpi slt, %9, %c0_i32_5 : i32
    %17 = vector.broadcast %16 : i1 to vector<32x128xi1>
    %18 = vector.broadcast %17 : vector<32x128xi1> to vector<32x128xi1>
    %19 = arith.xori %15, %18 : vector<32x128xi1>
    %20 = arith.andi %19, %13 : vector<32x128xi1>
    %21 = vector.broadcast %9 : i32 to vector<32x128xi32>
    %22 = arith.addi %11, %21 : vector<32x128xi32>
    %23 = arith.select %20, %22, %11 : vector<32x128xi1>, vector<32x128xi32>
    %c0_i32_6 = arith.constant 0 : i32
    %24 = vector.broadcast %c0_i32_6 : i32 to vector<32x128xi32>
    %25 = arith.cmpi eq, %23, %24 : vector<32x128xi32>
    %c15_i32 = arith.constant 15 : i32
    %26 = vector.broadcast %c15_i32 : i32 to vector<32x128xi32>
    %27 = arith.cmpi eq, %23, %26 : vector<32x128xi32>
    %c8_i32 = arith.constant 8 : i32
    %28 = vector.broadcast %c8_i32 : i32 to vector<32x128xi32>
    %29 = arith.cmpi slt, %7, %28 : vector<32x128xi32>
    %c120_i32 = arith.constant 120 : i32
    %30 = vector.broadcast %c120_i32 : i32 to vector<32x128xi32>
    %31 = arith.cmpi sge, %7, %30 : vector<32x128xi32>
    %cst_7 = arith.constant 0.000000e+00 : f32
    %32 = vector.broadcast %cst_7 : f32 to vector<32x128xf32>
    %c1_i32_8 = arith.constant 1 : i32
    %33 = tpu.dynamic_rotate %5 by %c1_i32_8 dim 0 : vector<32x128xf32>, i32 -> vector<32x128xf32>
    %cst_9 = arith.constant 0.000000e+00 : f32
    %34 = vector.broadcast %cst_9 : f32 to vector<32x128xf32>
    %35 = arith.select %25, %34, %33 : vector<32x128xi1>, vector<32x128xf32>
    %c8_i32_10 = arith.constant 8 : i32
    %36 = tpu.dynamic_rotate %35 by %c8_i32_10 dim 1 : vector<32x128xf32>, i32 -> vector<32x128xf32>
    %cst_11 = arith.constant 0.000000e+00 : f32
    %37 = vector.broadcast %cst_11 : f32 to vector<32x128xf32>
    %38 = arith.select %29, %37, %36 : vector<32x128xi1>, vector<32x128xf32>
    %c0_12 = arith.constant 0 : index
    %c0_13 = arith.constant 0 : index
    %c0_14 = arith.constant 0 : index
    %c0_15 = arith.constant 0 : index
    %39 = vector.load %arg2[%c0_12, %c0_13, %c0_14, %c0_15] : memref<1x9x1x128xf32, #tpu.memory_space<vmem>>, vector<1x1x1x128xf32>
    %40 = vector.shape_cast %39 : vector<1x1x1x128xf32> to vector<1x128xf32>
    %41 = vector.broadcast %40 : vector<1x128xf32> to vector<32x128xf32>
    %42 = arith.mulf %38, %41 : vector<32x128xf32>
    %43 = arith.addf %32, %42 : vector<32x128xf32>
    %c0_16 = arith.constant 0 : index
    %c1 = arith.constant 1 : index
    %c0_17 = arith.constant 0 : index
    %c0_18 = arith.constant 0 : index
    %44 = vector.load %arg2[%c0_16, %c1, %c0_17, %c0_18] : memref<1x9x1x128xf32, #tpu.memory_space<vmem>>, vector<1x1x1x128xf32>
    %45 = vector.shape_cast %44 : vector<1x1x1x128xf32> to vector<1x128xf32>
    %46 = vector.broadcast %45 : vector<1x128xf32> to vector<32x128xf32>
    %47 = arith.mulf %35, %46 : vector<32x128xf32>
    %48 = arith.addf %43, %47 : vector<32x128xf32>
    %c120_i32_19 = arith.constant 120 : i32
    %49 = tpu.dynamic_rotate %35 by %c120_i32_19 dim 1 : vector<32x128xf32>, i32 -> vector<32x128xf32>
    %cst_20 = arith.constant 0.000000e+00 : f32
    %50 = vector.broadcast %cst_20 : f32 to vector<32x128xf32>
    %51 = arith.select %31, %50, %49 : vector<32x128xi1>, vector<32x128xf32>
    %c0_21 = arith.constant 0 : index
    %c2 = arith.constant 2 : index
    %c0_22 = arith.constant 0 : index
    %c0_23 = arith.constant 0 : index
    %52 = vector.load %arg2[%c0_21, %c2, %c0_22, %c0_23] : memref<1x9x1x128xf32, #tpu.memory_space<vmem>>, vector<1x1x1x128xf32>
    %53 = vector.shape_cast %52 : vector<1x1x1x128xf32> to vector<1x128xf32>
    %54 = vector.broadcast %53 : vector<1x128xf32> to vector<32x128xf32>
    %55 = arith.mulf %51, %54 : vector<32x128xf32>
    %56 = arith.addf %48, %55 : vector<32x128xf32>
    %c8_i32_24 = arith.constant 8 : i32
    %57 = tpu.dynamic_rotate %5 by %c8_i32_24 dim 1 : vector<32x128xf32>, i32 -> vector<32x128xf32>
    %cst_25 = arith.constant 0.000000e+00 : f32
    %58 = vector.broadcast %cst_25 : f32 to vector<32x128xf32>
    %59 = arith.select %29, %58, %57 : vector<32x128xi1>, vector<32x128xf32>
    %c0_26 = arith.constant 0 : index
    %c3 = arith.constant 3 : index
    %c0_27 = arith.constant 0 : index
    %c0_28 = arith.constant 0 : index
    %60 = vector.load %arg2[%c0_26, %c3, %c0_27, %c0_28] : memref<1x9x1x128xf32, #tpu.memory_space<vmem>>, vector<1x1x1x128xf32>
    %61 = vector.shape_cast %60 : vector<1x1x1x128xf32> to vector<1x128xf32>
    %62 = vector.broadcast %61 : vector<1x128xf32> to vector<32x128xf32>
    %63 = arith.mulf %59, %62 : vector<32x128xf32>
    %64 = arith.addf %56, %63 : vector<32x128xf32>
    %c0_29 = arith.constant 0 : index
    %c4 = arith.constant 4 : index
    %c0_30 = arith.constant 0 : index
    %c0_31 = arith.constant 0 : index
    %65 = vector.load %arg2[%c0_29, %c4, %c0_30, %c0_31] : memref<1x9x1x128xf32, #tpu.memory_space<vmem>>, vector<1x1x1x128xf32>
    %66 = vector.shape_cast %65 : vector<1x1x1x128xf32> to vector<1x128xf32>
    %67 = vector.broadcast %66 : vector<1x128xf32> to vector<32x128xf32>
    %68 = arith.mulf %5, %67 : vector<32x128xf32>
    %69 = arith.addf %64, %68 : vector<32x128xf32>
    %c120_i32_32 = arith.constant 120 : i32
    %70 = tpu.dynamic_rotate %5 by %c120_i32_32 dim 1 : vector<32x128xf32>, i32 -> vector<32x128xf32>
    %cst_33 = arith.constant 0.000000e+00 : f32
    %71 = vector.broadcast %cst_33 : f32 to vector<32x128xf32>
    %72 = arith.select %31, %71, %70 : vector<32x128xi1>, vector<32x128xf32>
    %c0_34 = arith.constant 0 : index
    %c5 = arith.constant 5 : index
    %c0_35 = arith.constant 0 : index
    %c0_36 = arith.constant 0 : index
    %73 = vector.load %arg2[%c0_34, %c5, %c0_35, %c0_36] : memref<1x9x1x128xf32, #tpu.memory_space<vmem>>, vector<1x1x1x128xf32>
    %74 = vector.shape_cast %73 : vector<1x1x1x128xf32> to vector<1x128xf32>
    %75 = vector.broadcast %74 : vector<1x128xf32> to vector<32x128xf32>
    %76 = arith.mulf %72, %75 : vector<32x128xf32>
    %77 = arith.addf %69, %76 : vector<32x128xf32>
    %c31_i32 = arith.constant 31 : i32
    %78 = tpu.dynamic_rotate %5 by %c31_i32 dim 0 : vector<32x128xf32>, i32 -> vector<32x128xf32>
    %cst_37 = arith.constant 0.000000e+00 : f32
    %79 = vector.broadcast %cst_37 : f32 to vector<32x128xf32>
    %80 = arith.select %27, %79, %78 : vector<32x128xi1>, vector<32x128xf32>
    %c8_i32_38 = arith.constant 8 : i32
    %81 = tpu.dynamic_rotate %80 by %c8_i32_38 dim 1 : vector<32x128xf32>, i32 -> vector<32x128xf32>
    %cst_39 = arith.constant 0.000000e+00 : f32
    %82 = vector.broadcast %cst_39 : f32 to vector<32x128xf32>
    %83 = arith.select %29, %82, %81 : vector<32x128xi1>, vector<32x128xf32>
    %c0_40 = arith.constant 0 : index
    %c6 = arith.constant 6 : index
    %c0_41 = arith.constant 0 : index
    %c0_42 = arith.constant 0 : index
    %84 = vector.load %arg2[%c0_40, %c6, %c0_41, %c0_42] : memref<1x9x1x128xf32, #tpu.memory_space<vmem>>, vector<1x1x1x128xf32>
    %85 = vector.shape_cast %84 : vector<1x1x1x128xf32> to vector<1x128xf32>
    %86 = vector.broadcast %85 : vector<1x128xf32> to vector<32x128xf32>
    %87 = arith.mulf %83, %86 : vector<32x128xf32>
    %88 = arith.addf %77, %87 : vector<32x128xf32>
    %c0_43 = arith.constant 0 : index
    %c7 = arith.constant 7 : index
    %c0_44 = arith.constant 0 : index
    %c0_45 = arith.constant 0 : index
    %89 = vector.load %arg2[%c0_43, %c7, %c0_44, %c0_45] : memref<1x9x1x128xf32, #tpu.memory_space<vmem>>, vector<1x1x1x128xf32>
    %90 = vector.shape_cast %89 : vector<1x1x1x128xf32> to vector<1x128xf32>
    %91 = vector.broadcast %90 : vector<1x128xf32> to vector<32x128xf32>
    %92 = arith.mulf %80, %91 : vector<32x128xf32>
    %93 = arith.addf %88, %92 : vector<32x128xf32>
    %c120_i32_46 = arith.constant 120 : i32
    %94 = tpu.dynamic_rotate %80 by %c120_i32_46 dim 1 : vector<32x128xf32>, i32 -> vector<32x128xf32>
    %cst_47 = arith.constant 0.000000e+00 : f32
    %95 = vector.broadcast %cst_47 : f32 to vector<32x128xf32>
    %96 = arith.select %31, %95, %94 : vector<32x128xi1>, vector<32x128xf32>
    %c0_48 = arith.constant 0 : index
    %c8 = arith.constant 8 : index
    %c0_49 = arith.constant 0 : index
    %c0_50 = arith.constant 0 : index
    %97 = vector.load %arg2[%c0_48, %c8, %c0_49, %c0_50] : memref<1x9x1x128xf32, #tpu.memory_space<vmem>>, vector<1x1x1x128xf32>
    %98 = vector.shape_cast %97 : vector<1x1x1x128xf32> to vector<1x128xf32>
    %99 = vector.broadcast %98 : vector<1x128xf32> to vector<32x128xf32>
    %100 = arith.mulf %96, %99 : vector<32x128xf32>
    %101 = arith.addf %93, %100 : vector<32x128xf32>
    %c0_51 = arith.constant 0 : index
    %c0_52 = arith.constant 0 : index
    %c0_53 = arith.constant 0 : index
    %102 = vector.load %arg3[%c0_51, %c0_52, %c0_53] : memref<1x128x128xf32, #tpu.memory_space<vmem>>, vector<1x128x128xf32>
    %103 = vector.shape_cast %102 : vector<1x128x128xf32> to vector<128x128xf32>
    %cst_54 = arith.constant dense<0.000000e+00> : vector<32x128xf32>
    %104 = tpu.matmul %101, %103, %cst_54 {dimension_numbers = #tpu.dot_dimension_numbers<[1], [0], [0], [1], [0, 0, 1, 1], [], []>} : vector<32x128xf32>, vector<128x128xf32>, vector<32x128xf32> -> vector<32x128xf32>
    %c0_55 = arith.constant 0 : index
    %c0_56 = arith.constant 0 : index
    %c0_57 = arith.constant 0 : index
    %105 = vector.load %arg4[%c0_55, %c0_56, %c0_57] : memref<1x1x128xf32, #tpu.memory_space<vmem>>, vector<1x1x128xf32>
    %106 = vector.shape_cast %105 : vector<1x1x128xf32> to vector<1x128xf32>
    %107 = vector.broadcast %106 : vector<1x128xf32> to vector<32x128xf32>
    %108 = arith.addf %104, %107 : vector<32x128xf32>
    %c0_58 = arith.constant 0 : index
    %c0_59 = arith.constant 0 : index
    %109 = vector.load %arg6[%c0_58, %c0_59] : memref<32x128xf32, #tpu.memory_space<vmem>>, vector<32x128xf32>
    tpu.vector_store %arg6[%c0_58, %c0_59], %108 {strides = array<i32>} : memref<32x128xf32, #tpu.memory_space<vmem>>, vector<32x128xf32>,
    %c23_i32 = arith.constant 23 : i32
    %110 = arith.cmpi eq, %arg0, %c23_i32 : i32
    %111 = arith.extui %110 : i1 to i32
    %c0_i32_60 = arith.constant 0 : i32
    %112 = arith.cmpi ne, %111, %c0_i32_60 : i32
    scf.if %112 {
      %c0_61 = arith.constant 0 : index
      %c0_62 = arith.constant 0 : index
      %113 = vector.load %arg5[%c0_61, %c0_62] : memref<32x128xf32, #tpu.memory_space<vmem>>, vector<32x128xf32>
      tpu.vector_store %arg5[%c0_61, %c0_62], %108 {strides = array<i32>} : memref<32x128xf32, #tpu.memory_space<vmem>>, vector<32x128xf32>,
    } else {
    }
    return
  }
  func.func @transform_0(%arg0: i32) -> (i32, i32) {
    %c0_i32 = arith.constant 0 : i32
    %c0_i32_0 = arith.constant 0 : i32
    %c0_i32_1 = arith.constant 0 : i32
    return %c0_i32, %c0_i32_0 : i32, i32
  }
  func.func @transform_1(%arg0: i32) -> (i32, i32, i32, i32) {
    %c0_i32 = arith.constant 0 : i32
    %c0_i32_0 = arith.constant 0 : i32
    %c0_i32_1 = arith.constant 0 : i32
    %c0_i32_2 = arith.constant 0 : i32
    return %arg0, %c0_i32, %c0_i32_0, %c0_i32_1 : i32, i32, i32, i32
  }
  func.func @transform_2(%arg0: i32) -> (i32, i32, i32) {
    %c0_i32 = arith.constant 0 : i32
    %c0_i32_0 = arith.constant 0 : i32
    %c0_i32_1 = arith.constant 0 : i32
    return %arg0, %c0_i32, %c0_i32_0 : i32, i32, i32
  }
  func.func @transform_3(%arg0: i32) -> (i32, i32, i32) {
    %c0_i32 = arith.constant 0 : i32
    %c0_i32_0 = arith.constant 0 : i32
    %c0_i32_1 = arith.constant 0 : i32
    return %arg0, %c0_i32, %c0_i32_0 : i32, i32, i32
  }
  func.func @transform_4(%arg0: i32) -> (i32, i32) {
    %c0_i32 = arith.constant 0 : i32
    %c0_i32_0 = arith.constant 0 : i32
    %c0_i32_1 = arith.constant 0 : i32
    return %c0_i32, %c0_i32_0 : i32, i32
  }
}

</mosaic_0001>

<llo_original>
// kernel: middle_flow_pallas.1
$region0: #{middle_flow_pallas.1}
  #allocation0 [shape = 'u32[]', space=smem, size = 0x4, offset = 0x4, fixed_abs, tag = 'smem constant byte address 0x4 - core index']
  #allocation1 [shape = 'u32[72,128]{1,0:T(1,128)}', space=vmem, size = 0x9000, scoped, tag = 'internal scratch']
  #allocation2 [shape = 'f32[32,128]{1,0:T(8,128)}', space=vmem, size = 0x4000, scoped, tag = 'scratch operand']
  %s0 = inlined_call_operand.vmem [shape: f32[32,128], index: 0, kind: input, shape index: {}]
  %s1 = inlined_call_operand.vmem [shape: f32[24,9,1,128], index: 1, kind: input, shape index: {}]
  %s2 = inlined_call_operand.vmem [shape: f32[24,128,128], index: 2, kind: input, shape index: {}]
  %s3 = inlined_call_operand.vmem [shape: f32[24,1,128], index: 3, kind: input, shape index: {}]
  %s4 = inlined_call_operand.vmem [shape: f32[32,128], index: 4, kind: output, shape index: {}]
  %s5 = sld [smem:[#allocation0]]
  $region57: #{middle_flow_pallas.1} parent=0
    _
  %s7 = ssub.s32 1, %s5
  %s8 = scalar_select 0, %s7, %s5
  loop: start=0, step=1, limit=26
  $region2: #{middle_flow_pallas.1} parent=0 // loop_pre_header
    _
  $region3: #{middle_flow_pallas.1} parent=0 // loop_header
    %s10 = sphi 0, %s14
    %p11 = scmp.ge.s32.totalorder %s10, 26
    %s18 = sphi 0, %s18
    %s20 = sphi 0, %s18
    %s21 = sphi 0, %s20
    %s35 = sphi 0, %s21
    %s41 = sphi 0, %s43
    %s44 = sphi 0, %s41
    %s45 = sphi 0, %s44
    %s61 = sphi 0, %s45
    %s67 = sphi 0, %s69
    %s70 = sphi 0, %s67
    %s71 = sphi 0, %s70
    %s87 = sphi 0, %s71
    %s93 = sphi 0, %s95
    %s96 = sphi 0, %s93
    %s97 = sphi 0, %s96
    %s113 = sphi 0, %s97
    %s117 = sphi 0, %s117
    %s119 = sphi 0, %s117
    %s120 = sphi 0, %s119
    %s134 = sphi 0, %s120
  $region4: #{middle_flow_pallas.1} parent=0 // loop_header_branch
    %13 = sbr.rel (%p11) target = $region8
  $region5: #{middle_flow_pallas.1} parent=0 // loop_body
    %s15 = ssub.s32 %s10, 1
    %s16 = ssub.s32 %s10, 2
    %s17 = sadd.s32 %s10, 1
    %s19 = sadd.s32 %s18, 1
    %p22 = scmp.eq.s32.totalorder %s10, 23
    %p23 = scmp.ne.s32.totalorder %s18, %s20
    %p24 = scmp.eq.s32.totalorder %s10, 0
    %p25 = por %p23, %p24
    %p26 = scmp.ne.s32.totalorder %s18, %s20
    %p27 = scmp.eq.s32.totalorder %s15, 23
    %p28 = por %p26, %p27
    %p29 = scmp.ne.s32.totalorder %s20, %s21
    %p30 = scmp.eq.s32.totalorder %s15, 0
    %p31 = por %p29, %p30
    %p32 = scmp.ne.s32.totalorder %s20, %s21
    %p33 = scmp.eq.s32.totalorder %s16, 23
    %p34 = por %p32, %p33
    %p36 = scmp.ne.s32.totalorder %s21, %s35
    %p37 = scmp.eq.s32.totalorder %s16, 0
    %p38 = por %p36, %p37
    %s39 = ssub.s32 %s10, %s17
    %p40 = scmp.eq.s32.totalorder %s39, 0
    %s42 = sadd.s32 %s41, 1
    %s43 = scalar_select %p40, %s41, %s42
    %p46 = pneg %p40
    %p47 = scmp.eq.s32.totalorder %s10, 23
    %p48 = por %p46, %p47
    %p49 = scmp.ne.s32.totalorder %s41, %s44
    %p50 = scmp.eq.s32.totalorder %s10, 0
    %p51 = por %p49, %p50
    %p52 = scmp.ne.s32.totalorder %s41, %s44
    %p53 = scmp.eq.s32.totalorder %s15, 23
    %p54 = por %p52, %p53
    %p55 = scmp.ne.s32.totalorder %s44, %s45
    %p56 = scmp.eq.s32.totalorder %s15, 0
    %p57 = por %p55, %p56
    %p58 = scmp.ne.s32.totalorder %s44, %s45
    %p59 = scmp.eq.s32.totalorder %s16, 23
    %p60 = por %p58, %p59
    %p62 = scmp.ne.s32.totalorder %s45, %s61
    %p63 = scmp.eq.s32.totalorder %s16, 0
    %p64 = por %p62, %p63
    %s65 = ssub.s32 %s10, %s17
    %p66 = scmp.eq.s32.totalorder %s65, 0
    %s68 = sadd.s32 %s67, 1
    %s69 = scalar_select %p66, %s67, %s68
    %p72 = pneg %p66
    %p73 = scmp.eq.s32.totalorder %s10, 23
    %p74 = por %p72, %p73
    %p75 = scmp.ne.s32.totalorder %s67, %s70
    %p76 = scmp.eq.s32.totalorder %s10, 0
    %p77 = por %p75, %p76
    %p78 = scmp.ne.s32.totalorder %s67, %s70
    %p79 = scmp.eq.s32.totalorder %s15, 23
    %p80 = por %p78, %p79
    %p81 = scmp.ne.s32.totalorder %s70, %s71
    %p82 = scmp.eq.s32.totalorder %s15, 0
    %p83 = por %p81, %p82
    %p84 = scmp.ne.s32.totalorder %s70, %s71
    %p85 = scmp.eq.s32.totalorder %s16, 23
    %p86 = por %p84, %p85
    %p88 = scmp.ne.s32.totalorder %s71, %s87
    %p89 = scmp.eq.s32.totalorder %s16, 0
    %p90 = por %p88, %p89
    %s91 = ssub.s32 %s10, %s17
    %p92 = scmp.eq.s32.totalorder %s91, 0
    %s94 = sadd.s32 %s93, 1
    %s95 = scalar_select %p92, %s93, %s94
    %p98 = pneg %p92
    %p99 = scmp.eq.s32.totalorder %s10, 23
    %p100 = por %p98, %p99
    %p101 = scmp.ne.s32.totalorder %s93, %s96
    %p102 = scmp.eq.s32.totalorder %s10, 0
    %p103 = por %p101, %p102
    %p104 = scmp.ne.s32.totalorder %s93, %s96
    %p105 = scmp.eq.s32.totalorder %s15, 23
    %p106 = por %p104, %p105
    %p107 = scmp.ne.s32.totalorder %s96, %s97
    %p108 = scmp.eq.s32.totalorder %s15, 0
    %p109 = por %p107, %p108
    %p110 = scmp.ne.s32.totalorder %s96, %s97
    %p111 = scmp.eq.s32.totalorder %s16, 23
    %p112 = por %p110, %p111
    %p114 = scmp.ne.s32.totalorder %s97, %s113
    %p115 = scmp.eq.s32.totalorder %s16, 0
    %p116 = por %p114, %p115
    %s118 = sadd.s32 %s117, 1
    %p121 = scmp.eq.s32.totalorder %s10, 23
    %p122 = scmp.ne.s32.totalorder %s117, %s119
    %p123 = scmp.eq.s32.totalorder %s10, 0
    %p124 = por %p122, %p123
    %p125 = scmp.ne.s32.totalorder %s117, %s119
    %p126 = scmp.eq.s32.totalorder %s15, 23
    %p127 = por %p125, %p126
    %p128 = scmp.ne.s32.totalorder %s119, %s120
    %p129 = scmp.eq.s32.totalorder %s15, 0
    %p130 = por %p128, %p129
    %p131 = scmp.ne.s32.totalorder %s119, %s120
    %p132 = scmp.eq.s32.totalorder %s16, 23
    %p133 = por %p131, %p132
    %p135 = scmp.ne.s32.totalorder %s120, %s134
    %p136 = scmp.eq.s32.totalorder %s16, 0
    %p137 = por %p135, %p136
    %p138 = scmp.le.s32.totalorder 1, %s10
    %p139 = scmp.lt.s32.totalorder %s10, 25
    %p140 = pnand %p138, %p139
    %p141 = pneg %p140
    // Predicated region
    $region9: #{middle_flow_pallas.1} parent=5 // pred_check
      _
    $region10: #{middle_flow_pallas.1} parent=5 // pred_check_branch
      %143 = sbr.rel (%p140) target = $region12
    $region11: #{middle_flow_pallas.1} parent=5 // pred_region
      %s144 = ssub.s32 %s10, 1
      // Predicated region
      $region13: #{middle_flow_pallas.1} parent=11 // pred_check
        %p145 = pneg %p31
      $region14: #{middle_flow_pallas.1} parent=11 // pred_check_branch
        %147 = sbr.rel (%p145) target = $region16
      $region15: #{middle_flow_pallas.1} parent=11 // pred_region
        _
      $region16: #{middle_flow_pallas.1} parent=11 // pred_fallthru
        _
    $region12: #{middle_flow_pallas.1} parent=5 // pred_fallthru
      _
    %p148 = scmp.lt.s32.totalorder %s10, 24
    // Predicated region
    $region17: #{middle_flow_pallas.1} parent=5 // pred_check
      %p149 = pneg %p148
    $region18: #{middle_flow_pallas.1} parent=5 // pred_check_branch
      %151 = sbr.rel (%p149) target = $region20
    $region19: #{middle_flow_pallas.1} parent=5 // pred_region
      // Predicated region
      $region21: #{middle_flow_pallas.1} parent=19 // pred_check
        %p152 = pneg %p51
      $region22: #{middle_flow_pallas.1} parent=19 // pred_check_branch
        %154 = sbr.rel (%p152) target = $region24
      $region23: #{middle_flow_pallas.1} parent=19 // pred_region
        %p155 = scmp.lt.s32.totalorder %s10, 23
        %s156 = scalar_select %p155, %s10, 23
        %s157 = smul.addr %s156, 9
        %s158 = scalar_lea.vmem %s1, %s157
      $region24: #{middle_flow_pallas.1} parent=19 // pred_fallthru
        _
      // Predicated region
      $region25: #{middle_flow_pallas.1} parent=19 // pred_check
        %p159 = pneg %p77
      $region26: #{middle_flow_pallas.1} parent=19 // pred_check_branch
        %161 = sbr.rel (%p159) target = $region28
      $region27: #{middle_flow_pallas.1} parent=19 // pred_region
        %p162 = scmp.lt.s32.totalorder %s10, 23
        %s163 = scalar_select %p162, %s10, 23
        %s164 = smul.addr %s163, 16
        %s165 = smul.addr %s164, 8
        %s166 = scalar_lea.vmem %s2, %s165
      $region28: #{middle_flow_pallas.1} parent=19 // pred_fallthru
        _
      // Predicated region
      $region29: #{middle_flow_pallas.1} parent=19 // pred_check
        %p167 = pneg %p103
      $region30: #{middle_flow_pallas.1} parent=19 // pred_check_branch
        %169 = sbr.rel (%p167) target = $region32
      $region31: #{middle_flow_pallas.1} parent=19 // pred_region
        %p170 = scmp.lt.s32.totalorder %s10, 23
        %s171 = scalar_select %p170, %s10, 23
        %s172 = scalar_lea.vmem %s3, %s171
      $region32: #{middle_flow_pallas.1} parent=19 // pred_fallthru
        _
    $region20: #{middle_flow_pallas.1} parent=5 // pred_fallthru
      _
    %p173 = scmp.le.s32.totalorder 1, %s10
    %p174 = scmp.lt.s32.totalorder %s10, 25
    %p175 = pnand %p173, %p174
    %p176 = pneg %p175
    // Predicated region
    $region33: #{middle_flow_pallas.1} parent=5 // pred_check
      _
    $region34: #{middle_flow_pallas.1} parent=5 // pred_check_branch
      %178 = sbr.rel (%p175) target = $region36
    $region35: #{middle_flow_pallas.1} parent=5 // pred_region
      %s179 = ssub.s32 %s10, 1
      %p180 = pneg %p31
      %p181 = pneg %p28
      %p182 = scmp.lt.s32.totalorder %s15, 23
      %s183 = scalar_select %p182, %s15, 23
      %s184 = smul.addr %s183, 9
      %s185 = scalar_lea.vmem %s1, %s184
      %p186 = pneg %p57
      %p187 = pneg %p54
      %p188 = scmp.lt.s32.totalorder %s15, 23
      %s189 = scalar_select %p188, %s15, 23
      %s190 = smul.addr %s189, 16
      %s191 = smul.addr %s190, 8
      %s192 = scalar_lea.vmem %s2, %s191
      %p193 = pneg %p83
      %p194 = pneg %p80
      %p195 = scmp.lt.s32.totalorder %s15, 23
      %s196 = scalar_select %p195, %s15, 23
      %s197 = scalar_lea.vmem %s3, %s196
      %p198 = pneg %p109
      %p199 = pneg %p106
      %p200 = pneg %p130
      %p201 = pneg %p127
      %p202 = scmp.lt.s32.totalorder %s15, 23
      %s203 = scalar_select %p202, %s15, 23
      %s204 = smul.addr %s203, 9
      %s205 = scalar_lea.vmem %s1, %s204
      %p206 = scmp.lt.s32.totalorder %s15, 23
      %s207 = scalar_select %p206, %s15, 23
      %s208 = smul.addr %s207, 16
      %s209 = smul.addr %s208, 8
      %s210 = scalar_lea.vmem %s2, %s209
      %p211 = scmp.lt.s32.totalorder %s15, 23
      %s212 = scalar_select %p211, %s15, 23
      %s213 = scalar_lea.vmem %s3, %s212
      %p214 = scmp.eq.s32.totalorder %s15, 0
      // Predicated region
      $region37: #{middle_flow_pallas.1} parent=35 // pred_check
        %p215 = pneg %p214
      $region38: #{middle_flow_pallas.1} parent=35 // pred_check_branch
        %217 = sbr.rel (%p215) target = $region40
      $region39: #{middle_flow_pallas.1} parent=35 // pred_region
        %v218 = vld [vmem:[%s0] sm:$0xff]
        %v219 = vld [vmem:[%s0 + $0x8] sm:$0xff]
        %v220 = vld [vmem:[%s0 + $0x10] sm:$0xff]
        %v221 = vld [vmem:[%s0 + $0x18] sm:$0xff]
        %222 = vst [vmem:[#allocation2] sm:$0xff] %v218
        %223 = vst [vmem:[#allocation2 + $0x8] sm:$0xff] %v219
        %224 = vst [vmem:[#allocation2 + $0x10] sm:$0xff] %v220
        %225 = vst [vmem:[#allocation2 + $0x18] sm:$0xff] %v221
      $region40: #{middle_flow_pallas.1} parent=35 // pred_fallthru
        _
      %v226 = vld [vmem:[#allocation2] sm:$0xff]
      %v227 = vld [vmem:[#allocation2 + $0x8] sm:$0xff]
      %v228 = vld [vmem:[#allocation2 + $0x10] sm:$0xff]
      %v229 = vld [vmem:[#allocation2 + $0x18] sm:$0xff]
      %v230 = vmax.f32 %v226, 0.0
      %v231 = vmax.f32 %v227, 0.0
      %v232 = vmax.f32 %v228, 0.0
      %v233 = vmax.f32 %v229, 0.0
      %v234 = vlaneseq
      %v235 = vshrl.u32 %v234, 7
      %v236 = vadd.s32 %v235, 8
      %v237 = vadd.s32 %v235, 16
      %v238 = vadd.s32 %v235, 24
      %v239 = vlaneseq
      %v240 = vand.u32 %v239, 127
      %vm241 = vcmp.lt.s32.totalorder %v235, 0
      %v242 = vsub.s32 0, %v235
      %v243 = vsel %vm241, %v242, %v235
      %v244 = vshrl.u32 %v243, 4
      %v245 = vand.u32 %v243, 15
      %v246 = vsub.s32 0, %v245
      %v247 = vsel %vm241, %v246, %v245
      %vm248 = vcmp.lt.s32.totalorder %v236, 0
      %v249 = vsub.s32 0, %v236
      %v250 = vsel %vm248, %v249, %v236
      %v251 = vshrl.u32 %v250, 4
      %v252 = vand.u32 %v250, 15
      %v253 = vsub.s32 0, %v252
      %v254 = vsel %vm248, %v253, %v252
      %vm255 = vcmp.lt.s32.totalorder %v237, 0
      %v256 = vsub.s32 0, %v237
      %v257 = vsel %vm255, %v256, %v237
      %v258 = vshrl.u32 %v257, 4
      %v259 = vand.u32 %v257, 15
      %v260 = vsub.s32 0, %v259
      %v261 = vsel %vm255, %v260, %v259
      %vm262 = vcmp.lt.s32.totalorder %v238, 0
      %v263 = vsub.s32 0, %v238
      %v264 = vsel %vm262, %v263, %v238
      %v265 = vshrl.u32 %v264, 4
      %v266 = vand.u32 %v264, 15
      %v267 = vsub.s32 0, %v266
      %v268 = vsel %vm262, %v267, %v266
      %vm269 = vcmp.ne.s32.totalorder %v247, 0
      %vm270 = vcmp.ne.s32.totalorder %v254, 0
      %vm271 = vcmp.ne.s32.totalorder %v261, 0
      %vm272 = vcmp.ne.s32.totalorder %v268, 0
      %vm273 = vcmp.lt.s32.totalorder %v247, 0
      %vm274 = vcmp.lt.s32.totalorder %v254, 0
      %vm275 = vcmp.lt.s32.totalorder %v261, 0
      %vm276 = vcmp.lt.s32.totalorder %v268, 0
      %vm277 = vmand %vm273, %vm269
      %vm278 = vmand %vm274, %vm270
      %vm279 = vmand %vm275, %vm271
      %vm280 = vmand %vm276, %vm272
      %v281 = vadd.s32 %v247, 16
      %v282 = vadd.s32 %v254, 16
      %v283 = vadd.s32 %v261, 16
      %v284 = vadd.s32 %v268, 16
      %v285 = vsel %vm277, %v281, %v247
      %v286 = vsel %vm278, %v282, %v254
      %v287 = vsel %vm279, %v283, %v261
      %v288 = vsel %vm280, %v284, %v268
      %vm289 = vcmp.eq.s32.totalorder %v285, 0
      %vm290 = vcmp.eq.s32.totalorder %v286, 0
      %vm291 = vcmp.eq.s32.totalorder %v287, 0
      %vm292 = vcmp.eq.s32.totalorder %v288, 0
      %vm293 = vcmp.eq.s32.totalorder %v285, 15
      %vm294 = vcmp.eq.s32.totalorder %v286, 15
      %vm295 = vcmp.eq.s32.totalorder %v287, 15
      %vm296 = vcmp.eq.s32.totalorder %v288, 15
      %vm297 = vcmp.lt.s32.totalorder %v240, 8
      %vm298 = vcmp.ge.s32.totalorder %v240, 120
      %v299 = vrot.slane %v230, 7
      %v300 = vrot.slane %v231, 7
      %v301 = vrot.slane %v232, 7
      %v302 = vrot.slane %v233, 7
      %vm303 = vcmp.lt.s32.totalorder %v235, 1
      %v304 = vsel %vm303, %v301, %v302
      %v305 = vsel %vm303, %v300, %v301
      %v306 = vsel %vm303, %v299, %v300
      %v307 = vsel %vm303, %v302, %v299
      %v308 = vsel %vm289, 0.0, %v307
      %v309 = vsel %vm290, 0.0, %v306
      %v310 = vsel %vm291, 0.0, %v305
      %v311 = vsel %vm292, 0.0, %v304
      %312 = vrot.lane.b32.xlu0 %v308, 8
      %v313 = vpop.permute.xlu0 %312
      %314 = vrot.lane.b32.xlu0 %v309, 8
      %v315 = vpop.permute.xlu0 %314
      %316 = vrot.lane.b32.xlu0 %v310, 8
      %v317 = vpop.permute.xlu0 %316
      %318 = vrot.lane.b32.xlu0 %v311, 8
      %v319 = vpop.permute.xlu0 %318
      %v320 = vsel %vm297, 0.0, %v313
      %v321 = vsel %vm297, 0.0, %v315
      %v322 = vsel %vm297, 0.0, %v317
      %v323 = vsel %vm297, 0.0, %v319
      %v324 = vld [vmem:[%s205] sm:$0x1]
      %v326 = vperm.slane %v324, 0
      %v328 = vmul.f32 %v320, %v326
      %v329 = vmul.f32 %v321, %v326
      %v330 = vmul.f32 %v322, %v326
      %v331 = vmul.f32 %v323, %v326
      %v332 = vadd.f32 %v328, 0.0
      %v333 = vadd.f32 %v329, 0.0
      %v334 = vadd.f32 %v330, 0.0
      %v335 = vadd.f32 %v331, 0.0
      %s336 = scalar_lea.vmem %s205, 1
      %v337 = vld [vmem:[%s336] sm:$0x1]
      %v339 = vperm.slane %v337, 0
      %v341 = vmul.f32 %v308, %v339
      %v342 = vmul.f32 %v309, %v339
      %v343 = vmul.f32 %v310, %v339
      %v344 = vmul.f32 %v311, %v339
      %v345 = vadd.f32 %v332, %v341
      %v346 = vadd.f32 %v333, %v342
      %v347 = vadd.f32 %v334, %v343
      %v348 = vadd.f32 %v335, %v344
      %349 = vrot.lane.b32.xlu0 %v308, 120
      %v350 = vpop.permute.xlu0 %349
      %351 = vrot.lane.b32.xlu0 %v309, 120
      %v352 = vpop.permute.xlu0 %351
      %353 = vrot.lane.b32.xlu0 %v310, 120
      %v354 = vpop.permute.xlu0 %353
      %355 = vrot.lane.b32.xlu0 %v311, 120
      %v356 = vpop.permute.xlu0 %355
      %v357 = vsel %vm298, 0.0, %v350
      %v358 = vsel %vm298, 0.0, %v352
      %v359 = vsel %vm298, 0.0, %v354
      %v360 = vsel %vm298, 0.0, %v356
      %s361 = scalar_lea.vmem %s205, 2
      %v362 = vld [vmem:[%s361] sm:$0x1]
      %v364 = vperm.slane %v362, 0
      %v366 = vmul.f32 %v357, %v364
      %v367 = vmul.f32 %v358, %v364
      %v368 = vmul.f32 %v359, %v364
      %v369 = vmul.f32 %v360, %v364
      %v370 = vadd.f32 %v345, %v366
      %v371 = vadd.f32 %v346, %v367
      %v372 = vadd.f32 %v347, %v368
      %v373 = vadd.f32 %v348, %v369
      %374 = vrot.lane.b32.xlu0 %v230, 8
      %v375 = vpop.permute.xlu0 %374
      %376 = vrot.lane.b32.xlu0 %v231, 8
      %v377 = vpop.permute.xlu0 %376
      %378 = vrot.lane.b32.xlu0 %v232, 8
      %v379 = vpop.permute.xlu0 %378
      %380 = vrot.lane.b32.xlu0 %v233, 8
      %v381 = vpop.permute.xlu0 %380
      %v382 = vsel %vm297, 0.0, %v375
      %v383 = vsel %vm297, 0.0, %v377
      %v384 = vsel %vm297, 0.0, %v379
      %v385 = vsel %vm297, 0.0, %v381
      %s386 = scalar_lea.vmem %s205, 3
      %v387 = vld [vmem:[%s386] sm:$0x1]
      %v389 = vperm.slane %v387, 0
      %v391 = vmul.f32 %v382, %v389
      %v392 = vmul.f32 %v383, %v389
      %v393 = vmul.f32 %v384, %v389
      %v394 = vmul.f32 %v385, %v389
      %v395 = vadd.f32 %v370, %v391
      %v396 = vadd.f32 %v371, %v392
      %v397 = vadd.f32 %v372, %v393
      %v398 = vadd.f32 %v373, %v394
      %s399 = scalar_lea.vmem %s205, 4
      %v400 = vld [vmem:[%s399] sm:$0x1]
      %v402 = vperm.slane %v400, 0
      %v404 = vmul.f32 %v230, %v402
      %v405 = vmul.f32 %v231, %v402
      %v406 = vmul.f32 %v232, %v402
      %v407 = vmul.f32 %v233, %v402
      %v408 = vadd.f32 %v395, %v404
      %v409 = vadd.f32 %v396, %v405
      %v410 = vadd.f32 %v397, %v406
      %v411 = vadd.f32 %v398, %v407
      %412 = vrot.lane.b32.xlu0 %v230, 120
      %v413 = vpop.permute.xlu0 %412
      %414 = vrot.lane.b32.xlu0 %v231, 120
      %v415 = vpop.permute.xlu0 %414
      %416 = vrot.lane.b32.xlu0 %v232, 120
      %v417 = vpop.permute.xlu0 %416
      %418 = vrot.lane.b32.xlu0 %v233, 120
      %v419 = vpop.permute.xlu0 %418
      %v420 = vsel %vm298, 0.0, %v413
      %v421 = vsel %vm298, 0.0, %v415
      %v422 = vsel %vm298, 0.0, %v417
      %v423 = vsel %vm298, 0.0, %v419
      %s424 = scalar_lea.vmem %s205, 5
      %v425 = vld [vmem:[%s424] sm:$0x1]
      %v427 = vperm.slane %v425, 0
      %v429 = vmul.f32 %v420, %v427
      %v430 = vmul.f32 %v421, %v427
      %v431 = vmul.f32 %v422, %v427
      %v432 = vmul.f32 %v423, %v427
      %v433 = vadd.f32 %v408, %v429
      %v434 = vadd.f32 %v409, %v430
      %v435 = vadd.f32 %v410, %v431
      %v436 = vadd.f32 %v411, %v432
      %v437 = vrot.slane %v230, 1
      %v438 = vrot.slane %v231, 1
      %v439 = vrot.slane %v232, 1
      %v440 = vrot.slane %v233, 1
      %vm441 = vcmp.lt.s32.totalorder %v235, 7
      %v442 = vsel %vm441, %v439, %v440
      %v443 = vsel %vm441, %v438, %v439
      %v444 = vsel %vm441, %v437, %v438
      %v445 = vsel %vm441, %v440, %v437
      %v446 = vsel %vm293, 0.0, %v444
      %v447 = vsel %vm294, 0.0, %v443
      %v448 = vsel %vm295, 0.0, %v442
      %v449 = vsel %vm296, 0.0, %v445
      %450 = vrot.lane.b32.xlu0 %v446, 8
      %v451 = vpop.permute.xlu0 %450
      %452 = vrot.lane.b32.xlu0 %v447, 8
      %v453 = vpop.permute.xlu0 %452
      %454 = vrot.lane.b32.xlu0 %v448, 8
      %v455 = vpop.permute.xlu0 %454
      %456 = vrot.lane.b32.xlu0 %v449, 8
      %v457 = vpop.permute.xlu0 %456
      %v458 = vsel %vm297, 0.0, %v451
      %v459 = vsel %vm297, 0.0, %v453
      %v460 = vsel %vm297, 0.0, %v455
      %v461 = vsel %vm297, 0.0, %v457
      %s462 = scalar_lea.vmem %s205, 6
      %v463 = vld [vmem:[%s462] sm:$0x1]
      %v465 = vperm.slane %v463, 0
      %v467 = vmul.f32 %v458, %v465
      %v468 = vmul.f32 %v459, %v465
      %v469 = vmul.f32 %v460, %v465
      %v470 = vmul.f32 %v461, %v465
      %v471 = vadd.f32 %v433, %v467
      %v472 = vadd.f32 %v434, %v468
      %v473 = vadd.f32 %v435, %v469
      %v474 = vadd.f32 %v436, %v470
      %s475 = scalar_lea.vmem %s205, 7
      %v476 = vld [vmem:[%s475] sm:$0x1]
      %v478 = vperm.slane %v476, 0
      %v480 = vmul.f32 %v446, %v478
      %v481 = vmul.f32 %v447, %v478
      %v482 = vmul.f32 %v448, %v478
      %v483 = vmul.f32 %v449, %v478
      %v484 = vadd.f32 %v471, %v480
      %v485 = vadd.f32 %v472, %v481
      %v486 = vadd.f32 %v473, %v482
      %v487 = vadd.f32 %v474, %v483
      %488 = vrot.lane.b32.xlu0 %v446, 120
      %v489 = vpop.permute.xlu0 %488
      %490 = vrot.lane.b32.xlu0 %v447, 120
      %v491 = vpop.permute.xlu0 %490
      %492 = vrot.lane.b32.xlu0 %v448, 120
      %v493 = vpop.permute.xlu0 %492
      %494 = vrot.lane.b32.xlu0 %v449, 120
      %v495 = vpop.permute.xlu0 %494
      %v496 = vsel %vm298, 0.0, %v489
      %v497 = vsel %vm298, 0.0, %v491
      %v498 = vsel %vm298, 0.0, %v493
      %v499 = vsel %vm298, 0.0, %v495
      %s500 = scalar_lea.vmem %s205, 8
      %v501 = vld [vmem:[%s500] sm:$0x1]
      %v503 = vperm.slane %v501, 0
      %v505 = vmul.f32 %v496, %v503
      %v506 = vmul.f32 %v497, %v503
      %v507 = vmul.f32 %v498, %v503
      %v508 = vmul.f32 %v499, %v503
      %v509 = vadd.f32 %v484, %v505
      %v510 = vadd.f32 %v485, %v506
      %v511 = vadd.f32 %v486, %v507
      %v512 = vadd.f32 %v487, %v508
      %v513 = vld [vmem:[%s210] sm:$0xff]
      %v514 = vld [vmem:[%s210 + $0x8] sm:$0xff]
      %v515 = vld [vmem:[%s210 + $0x10] sm:$0xff]
      %v516 = vld [vmem:[%s210 + $0x18] sm:$0xff]
      %v517 = vld [vmem:[%s210 + $0x20] sm:$0xff]
      %v518 = vld [vmem:[%s210 + $0x28] sm:$0xff]
      %v519 = vld [vmem:[%s210 + $0x30] sm:$0xff]
      %v520 = vld [vmem:[%s210 + $0x38] sm:$0xff]
      %v521 = vld [vmem:[%s210 + $0x40] sm:$0xff]
      %v522 = vld [vmem:[%s210 + $0x48] sm:$0xff]
      %v523 = vld [vmem:[%s210 + $0x50] sm:$0xff]
      %v524 = vld [vmem:[%s210 + $0x58] sm:$0xff]
      %v525 = vld [vmem:[%s210 + $0x60] sm:$0xff]
      %v526 = vld [vmem:[%s210 + $0x68] sm:$0xff]
      %v527 = vld [vmem:[%s210 + $0x70] sm:$0xff]
      %v528 = vld [vmem:[%s210 + $0x78] sm:$0xff]
      %v529 = vld [vmem:[%s213] sm:$0x1]
      %v531 = vperm.slane %v529, 0
      %533 = vmatpush.msra.mxu0 %v528
      %534 = vmatpush.msra.mxu0 %v527
      %535 = vmatpush.msra.mxu0 %v526
      %536 = vmatpush.msra.mxu0 %v525
      %537 = vmatpush.msra.mxu0 %v524
      %538 = vmatpush.msra.mxu0 %v523
      %539 = vmatpush.msra.mxu0 %v522
      %540 = vmatpush.msra.mxu0 %v521
      %541 = vmatpush.msra.mxu0 %v520
      %542 = vmatpush.msra.mxu0 %v519
      %543 = vmatpush.msra.mxu0 %v518
      %544 = vmatpush.msra.mxu0 %v517
      %545 = vmatpush.msra.mxu0 %v516
      %546 = vmatpush.msra.mxu0 %v515
      %547 = vmatpush.msra.mxu0 %v514
      %548 = vmatpush.msra.mxu0 %v513
      %549 = vmatmul.f32.gmra.mxu0 %v509
      %v550 = vpop.f32.mrf.mxu0
      %v551 = vadd.f32 %v531, %v550
      %552 = vmatmul.f32.gmra.mxu0 %v510
      %v553 = vpop.f32.mrf.mxu0
      %v554 = vadd.f32 %v531, %v553
      %555 = vmatmul.f32.gmra.mxu0 %v511
      %v556 = vpop.f32.mrf.mxu0
      %v557 = vadd.f32 %v531, %v556
      %558 = vmatmul.f32.gmra.mxu0 %v512
      %v559 = vpop.f32.mrf.mxu0
      %v560 = vadd.f32 %v531, %v559
      %561 = vdwg.mxu0
      %562 = vst [vmem:[#allocation2] sm:$0xff] %v551
      %563 = vst [vmem:[#allocation2 + $0x8] sm:$0xff] %v554
      %564 = vst [vmem:[#allocation2 + $0x10] sm:$0xff] %v557
      %565 = vst [vmem:[#allocation2 + $0x18] sm:$0xff] %v560
      %p566 = scmp.eq.s32.totalorder %s15, 23
      // Predicated region
      $region41: #{middle_flow_pallas.1} parent=35 // pred_check
        %p567 = pneg %p566
      $region42: #{middle_flow_pallas.1} parent=35 // pred_check_branch
        %569 = sbr.rel (%p567) target = $region44
      $region43: #{middle_flow_pallas.1} parent=35 // pred_region
        %570 = vst [vmem:[%s4] sm:$0xff] %v551
        %571 = vst [vmem:[%s4 + $0x8] sm:$0xff] %v554
        %572 = vst [vmem:[%s4 + $0x10] sm:$0xff] %v557
        %573 = vst [vmem:[%s4 + $0x18] sm:$0xff] %v560
      $region44: #{middle_flow_pallas.1} parent=35 // pred_fallthru
        _
      // Predicated region
      $region45: #{middle_flow_pallas.1} parent=35 // pred_check
        %p574 = pneg %p127
      $region46: #{middle_flow_pallas.1} parent=35 // pred_check_branch
        %576 = sbr.rel (%p574) target = $region48
      $region47: #{middle_flow_pallas.1} parent=35 // pred_region
        _
      $region48: #{middle_flow_pallas.1} parent=35 // pred_fallthru
        _
      // Predicated region
      $region49: #{middle_flow_pallas.1} parent=35 // pred_check
        %p577 = pneg %p127
      $region50: #{middle_flow_pallas.1} parent=35 // pred_check_branch
        %579 = sbr.rel (%p577) target = $region52
      $region51: #{middle_flow_pallas.1} parent=35 // pred_region
        _
      $region52: #{middle_flow_pallas.1} parent=35 // pred_fallthru
        _
    $region36: #{middle_flow_pallas.1} parent=5 // pred_fallthru
      _
    %p580 = scmp.le.s32.totalorder 2, %s10
    // Predicated region
    $region53: #{middle_flow_pallas.1} parent=5 // pred_check
      %p581 = pneg %p580
    $region54: #{middle_flow_pallas.1} parent=5 // pred_check_branch
      %583 = sbr.rel (%p581) target = $region56
    $region55: #{middle_flow_pallas.1} parent=5 // pred_region
      %s584 = ssub.s32 %s10, 2
    $region56: #{middle_flow_pallas.1} parent=5 // pred_fallthru
      _
  $region6: #{middle_flow_pallas.1} parent=0 // loop_footer
    %s14 = sadd.s32 1, %s10
  $region7: #{middle_flow_pallas.1} parent=0 // loop_footer_branch
    %9 = sbr.rel target = $region3
  $region8: #{middle_flow_pallas.1} parent=0 // loop_exit
    _

</llo_original>
